<compile_context>
chip_gen: v6e
topology: v6e:2x2x1
jax: 0.10.0
libtpu: 0.0.40
codegen_flags: <defaults>
</compile_context>

<pallas_src>
import functools

import jax
import jax.numpy as jnp
from jax import lax
from jax.experimental import pallas as pl
from jax.experimental.pallas import tpu as pltpu


def _round_up(a: int, b: int) -> int:
    return (a + b - 1) // b * b


def _supports_int8_mxu() -> bool:
    """v5e/v6e MXUs take int8 operands; v7x is bf16/fp8 only."""
    try:
        kind = jax.devices()[0].device_kind.lower()
    except Exception:
        return True
    return not ("v7" in kind or "7x" in kind)


def _linear_relu_kernel(x_ref, w_ref, b_ref, o_ref, acc_ref, *, alpha, int8_mxu):
    # x_ref:   (TM, TK) int8 activation tile
    # w_ref:   (TK, TN) int8 weight tile (pre-transposed; lane-dense N)
    # b_ref:   (1, TN)  f32 bias row, beta already folded in
    # o_ref:   (TM, TN) int8 output tile
    # acc_ref: (TM, TN) int32 (int8 MXU path) or f32 (bf16 path) scratch;
    #          persists across the K grid axis.
    k = pl.program_id(2)

    @pl.when(k == 0)
    def _():
        acc_ref[...] = jnp.zeros_like(acc_ref)

    if int8_mxu:
        # Native int8 MXU: int8 x int8 -> int32, integer-exact for any K.
        acc_ref[...] += lax.dot_general(
            x_ref[...], w_ref[...],
            dimension_numbers=(((1,), (0,)), ((), ())),
            preferred_element_type=jnp.int32,
        )
    else:
        # v7x fallback: int8 values are exact in bf16; MXU accumulates in f32.
        # TODO(synk): f32 accumulation is only integer-exact while |acc|<=2^24
        # (worst-case int8 operands cross it around K ~ 1024); add split-K or
        # compensated accumulation on v7x if bit-exactness matters there.
        acc_ref[...] += lax.dot_general(
            x_ref[...].astype(jnp.bfloat16), w_ref[...].astype(jnp.bfloat16),
            dimension_numbers=(((1,), (0,)), ((), ())),
            preferred_element_type=jnp.float32,
        )

    @pl.when(k == pl.num_programs(2) - 1)
    def _():
        y = acc_ref[...].astype(jnp.float32) * alpha + b_ref[...]
        y = jnp.maximum(y, 0.0)                   # ReLU
        y = jnp.clip(jnp.rint(y), -128.0, 127.0)  # round + saturate to int8
        o_ref[...] = y.astype(o_ref.dtype)


def prepare_weight(weight, tn, tk):
    """Pad weight (N, K) and transpose once to (Kp, Np).  Cacheable: the
    weight is static, so do this once per layer, not per call."""
    out_f, in_f = weight.shape
    np_, kp = _round_up(out_f, tn), _round_up(in_f, tk)
    wp = weight
    if np_ != out_f or kp != in_f:
        wp = jnp.pad(weight, ((0, np_ - out_f), (0, kp - in_f)))
    return wp.T  # (Kp, Np), lane-dense N for the MXU RHS


def prepare_bias(bias, beta, tn):
    """Fold beta into the bias and pad once.  Cacheable like the weight."""
    out_f = bias.shape[-1]
    np_ = _round_up(out_f, tn)
    b = bias.astype(jnp.float32) * jnp.float32(beta)
    if np_ != out_f:
        b = jnp.pad(b, ((0, 0), (0, np_ - out_f)))
    return b  # (1, Np) f32


def w8a8b8o8_linear_relu(x, weight, bias, alpha, beta, *, tm=512, tn=512, tk=1024):
    """x: (..., K) int8; weight: (N, K) int8; bias: (1, N) int8 -> (..., N) int8."""
    out_f, in_f = weight.shape
    orig_shape = x.shape
    xm = x.reshape(-1, in_f)
    m = xm.shape[0]

    # int8 native tiling: sublane multiple of 32, lane multiple of 128.
    tm = min(tm, _round_up(m, 32))
    tn = min(tn, _round_up(out_f, 128))
    tk = min(tk, _round_up(in_f, 128))
    mp, np_, kp = _round_up(m, tm), _round_up(out_f, tn), _round_up(in_f, tk)

    # Activation padding (pick tiles dividing production shapes so this is a
    # no-op; weight/bias prep should be cached by the caller in production).
    xp = xm if (mp == m and kp == in_f) else jnp.pad(xm, ((0, mp - m), (0, kp - in_f)))
    wt = prepare_weight(weight, tn, tk)            # (Kp, Np) int8
    bf = prepare_bias(bias, beta, tn)              # (1, Np) f32

    int8_mxu = _supports_int8_mxu()
    acc_dtype = jnp.int32 if int8_mxu else jnp.float32

    # NOTE: alpha is baked into the kernel (recompiles per distinct alpha);
    # pass it as an SMEM scalar if it varies widely across layers.
    kernel = functools.partial(_linear_relu_kernel,
                               alpha=float(alpha), int8_mxu=int8_mxu)

    # VMEM budget: double-buffered int8 x/w/out tiles + accumulator + bias,
    # with ~2x headroom, clamped to stay sane on v7x's 64 MiB/TC.
    vmem_bytes = 2 * (tm * tk + tk * tn + tm * tn) + 4 * tm * tn + 4 * np_
    vmem_limit = max(32 << 20, min(64 << 20, 2 * vmem_bytes))

    y = pl.pallas_call(
        kernel,
        out_shape=jax.ShapeDtypeStruct((mp, np_), jnp.int8),
        grid_spec=pltpu.PrefetchScalarGridSpec(
            num_scalar_prefetch=0,
            grid=(mp // tm, np_ // tn, kp // tk),
            in_specs=[
                pl.BlockSpec((tm, tk), lambda i, j, k: (i, k)),   # x tile
                pl.BlockSpec((tk, tn), lambda i, j, k: (k, j)),   # w^T tile
                pl.BlockSpec((1, tn), lambda i, j, k: (0, j)),    # bias row
            ],
            out_specs=pl.BlockSpec((tm, tn), lambda i, j, k: (i, j)),
            scratch_shapes=[pltpu.VMEM((tm, tn), acc_dtype)],
        ),
        compiler_params=pltpu.CompilerParams(
            dimension_semantics=("parallel", "parallel", "arbitrary"),
            vmem_limit_bytes=vmem_limit,
        ),
    )(xp, wt, bf)

    y = y[:m, :out_f]
    return y.reshape(*orig_shape[:-1], out_f)


if __name__ == "__main__":
    # Shapes implied by the module: Linear(in_features=32, out_features=64),
    # int8 activations (batch=2, seq=8, in_features=32).
    batch, seq, in_features, out_features = 2, 8, 32, 64
    alpha, beta = 0.02, 0.01

    key = jax.random.PRNGKey(0)
    kx, kw, kb = jax.random.split(key, 3)

    weight = jax.random.randint(kw, (out_features, in_features), -127, 127,
                                dtype=jnp.int32).astype(jnp.int8)
    bias = jax.random.randint(kb, (1, out_features), -127, 127,
                              dtype=jnp.int32).astype(jnp.int8)
    x = jax.random.randint(kx, (batch, seq, in_features), -127, 127,
                           dtype=jnp.int32).astype(jnp.int8)

    y = w8a8b8o8_linear_relu(x, weight, bias, alpha, beta)
    y = jax.block_until_ready(y)

    # Reference (plain JAX, same math as the CUTLASS epilogue).
    x2 = x.reshape(-1, in_features).astype(jnp.int32)
    acc = x2 @ weight.astype(jnp.int32).T
    yf = alpha * acc.astype(jnp.float32) + beta * bias.astype(jnp.float32)
    y_ref = jnp.clip(jnp.rint(jnp.maximum(yf, 0.0)), -128, 127).astype(jnp.int8)
    y_ref = y_ref.reshape(batch, seq, out_features)

    assert y.shape == (batch, seq, out_features)
    assert y.dtype == jnp.int8
    max_diff = int(jnp.max(jnp.abs(y.astype(jnp.int32) - y_ref.astype(jnp.int32))))
    assert max_diff <= 1, f"max abs diff vs reference: {max_diff}"

    print("KERNEL_OK")
</pallas_src>

<mosaic_0001>
module attributes {stable_mosaic.version = 11 : i64} {
  func.func @_linear_relu_kernel(%arg0: i32, %arg1: i32, %arg2: i32, %arg3: memref<32x128xi8, #tpu.memory_space<vmem>>, %arg4: memref<128x128xi8, #tpu.memory_space<vmem>>, %arg5: memref<1x128xf32, #tpu.memory_space<vmem>>, %arg6: memref<32x128xi8, #tpu.memory_space<vmem>>, %arg7: memref<32x128xi32, #tpu.memory_space<vmem>>) attributes {dimension_semantics = [#tpu.dimension_semantics<parallel>, #tpu.dimension_semantics<parallel>, #tpu.dimension_semantics<arbitrary>], iteration_bounds = array<i64: 1, 1, 1>, scalar_prefetch = 0 : i64, scratch_operands = 1 : i64, tpu.core_type = #tpu.core_type<tc>, window_params = [{transform_indices = @transform_0, window_bounds = array<i64: 32, 128>}, {transform_indices = @transform_1, window_bounds = array<i64: 128, 128>}, {transform_indices = @transform_2, window_bounds = array<i64: 1, 128>}, {transform_indices = @transform_3, window_bounds = array<i64: 32, 128>}]} {
    %c0_i32 = arith.constant 0 : i32
    %0 = arith.cmpi eq, %arg2, %c0_i32 : i32
    %1 = arith.extui %0 : i1 to i32
    %c0_i32_0 = arith.constant 0 : i32
    %2 = arith.cmpi ne, %1, %c0_i32_0 : i32
    scf.if %2 {
      %c0_i32_10 = arith.constant 0 : i32
      %12 = vector.broadcast %c0_i32_10 : i32 to vector<32x128xi32>
      %c0_11 = arith.constant 0 : index
      %c0_12 = arith.constant 0 : index
      %13 = vector.load %arg7[%c0_11, %c0_12] : memref<32x128xi32, #tpu.memory_space<vmem>>, vector<32x128xi32>
      tpu.vector_store %arg7[%c0_11, %c0_12], %12 {strides = array<i32>} : memref<32x128xi32, #tpu.memory_space<vmem>>, vector<32x128xi32>,
    } else {
    }
    %c0 = arith.constant 0 : index
    %c0_1 = arith.constant 0 : index
    %3 = vector.load %arg7[%c0, %c0_1] : memref<32x128xi32, #tpu.memory_space<vmem>>, vector<32x128xi32>
    %c0_2 = arith.constant 0 : index
    %c0_3 = arith.constant 0 : index
    %4 = vector.load %arg3[%c0_2, %c0_3] : memref<32x128xi8, #tpu.memory_space<vmem>>, vector<32x128xi8>
    %c0_4 = arith.constant 0 : index
    %c0_5 = arith.constant 0 : index
    %5 = vector.load %arg4[%c0_4, %c0_5] : memref<128x128xi8, #tpu.memory_space<vmem>>, vector<128x128xi8>
    %cst = arith.constant dense<0> : vector<32x128xi32>
    %6 = tpu.matmul %4, %5, %cst {dimension_numbers = #tpu.dot_dimension_numbers<[1], [0], [0], [1], [0, 0, 1, 1], [], []>} : vector<32x128xi8>, vector<128x128xi8>, vector<32x128xi32> -> vector<32x128xi32>
    %7 = arith.addi %3, %6 : vector<32x128xi32>
    %c0_6 = arith.constant 0 : index
    %c0_7 = arith.constant 0 : index
    %8 = vector.load %arg7[%c0_6, %c0_7] : memref<32x128xi32, #tpu.memory_space<vmem>>, vector<32x128xi32>
    tpu.vector_store %arg7[%c0_6, %c0_7], %7 {strides = array<i32>} : memref<32x128xi32, #tpu.memory_space<vmem>>, vector<32x128xi32>,
    %c0_i32_8 = arith.constant 0 : i32
    %9 = arith.cmpi eq, %arg2, %c0_i32_8 : i32
    %10 = arith.extui %9 : i1 to i32
    %c0_i32_9 = arith.constant 0 : i32
    %11 = arith.cmpi ne, %10, %c0_i32_9 : i32
    scf.if %11 {
      %c0_10 = arith.constant 0 : index
      %c0_11 = arith.constant 0 : index
      %12 = vector.load %arg7[%c0_10, %c0_11] : memref<32x128xi32, #tpu.memory_space<vmem>>, vector<32x128xi32>
      %13 = arith.sitofp %12 : vector<32x128xi32> to vector<32x128xf32>
      %cst_12 = arith.constant 2.000000e-02 : f32
      %14 = vector.broadcast %cst_12 : f32 to vector<32x128xf32>
      %15 = arith.mulf %13, %14 : vector<32x128xf32>
      %c0_13 = arith.constant 0 : index
      %c0_14 = arith.constant 0 : index
      %16 = vector.load %arg5[%c0_13, %c0_14] : memref<1x128xf32, #tpu.memory_space<vmem>>, vector<1x128xf32>
      %17 = vector.broadcast %16 : vector<1x128xf32> to vector<32x128xf32>
      %18 = arith.addf %15, %17 : vector<32x128xf32>
      %cst_15 = arith.constant 0.000000e+00 : f32
      %19 = vector.broadcast %cst_15 : f32 to vector<32x128xf32>
      %20 = arith.maximumf %18, %19 : vector<32x128xf32>
      %21 = math.roundeven %20 : vector<32x128xf32>
      %cst_16 = arith.constant -1.280000e+02 : f32
      %cst_17 = arith.constant 1.270000e+02 : f32
      %22 = vector.broadcast %cst_16 : f32 to vector<32x128xf32>
      %23 = arith.maximumf %22, %21 : vector<32x128xf32>
      %24 = vector.broadcast %cst_17 : f32 to vector<32x128xf32>
      %25 = arith.minimumf %24, %23 : vector<32x128xf32>
      %26 = arith.fptosi %25 : vector<32x128xf32> to vector<32x128xi8>
      %c0_18 = arith.constant 0 : index
      %c0_19 = arith.constant 0 : index
      %27 = vector.load %arg6[%c0_18, %c0_19] : memref<32x128xi8, #tpu.memory_space<vmem>>, vector<32x128xi8>
      tpu.vector_store %arg6[%c0_18, %c0_19], %26 {strides = array<i32>} : memref<32x128xi8, #tpu.memory_space<vmem>>, vector<32x128xi8>,
    } else {
    }
    return
  }
  func.func @transform_0(%arg0: i32, %arg1: i32, %arg2: i32) -> (i32, i32) {
    %c0_i32 = arith.constant 0 : i32
    return %arg0, %arg2 : i32, i32
  }
  func.func @transform_1(%arg0: i32, %arg1: i32, %arg2: i32) -> (i32, i32) {
    %c0_i32 = arith.constant 0 : i32
    return %arg2, %arg1 : i32, i32
  }
  func.func @transform_2(%arg0: i32, %arg1: i32, %arg2: i32) -> (i32, i32) {
    %c0_i32 = arith.constant 0 : i32
    %c0_i32_0 = arith.constant 0 : i32
    return %c0_i32, %arg1 : i32, i32
  }
  func.func @transform_3(%arg0: i32, %arg1: i32, %arg2: i32) -> (i32, i32) {
    %c0_i32 = arith.constant 0 : i32
    return %arg0, %arg1 : i32, i32
  }
}

</mosaic_0001>

<llo_original>
// kernel: tpu_custom_call.1
$region0: #{tpu_custom_call.1}
  #allocation0 [shape = 'u32[]', space=smem, size = 0x4, offset = 0x4, fixed_abs, tag = 'smem constant byte address 0x4 - core index']
  #allocation1 [shape = 'u32[144,128]{1,0:T(1,128)}', space=vmem, size = 0x12000, scoped, tag = 'internal scratch']
  #allocation2 [shape = 's32[32,128]{1,0:T(8,128)}', space=vmem, size = 0x4000, scoped, tag = 'scratch operand']
  %s0 = inlined_call_operand.hbm [shape: s8[32,128], index: 0, kind: input, shape index: {}]
  %s1 = inlined_call_operand.hbm [shape: s8[128,128], index: 1, kind: input, shape index: {}]
  %s2 = inlined_call_operand.vmem [shape: f32[1,128], index: 2, kind: input, shape index: {}]
  %s3 = inlined_call_operand.hbm [shape: s8[32,128], index: 3, kind: output, shape index: {}]
  %s4 = sld [smem:[#allocation0]]
  $region38: #{tpu_custom_call.1} parent=0
    _
  %s6 = ssub.s32 1, %s4
  %s7 = scalar_select 0, %s6, %s4
  $region1: #{tpu_custom_call.1} parent=0
    #allocation3 [shape = 'u8[4096]{0}', space=vmem, size = 0x1000, scoped, tag = 'input window, operand 0, single buffered']
    #allocation4 [shape = 's32[1]{0}', space=sflag, size = 0x4, scoped, tag = 'scoped memory for tpu_custom_call.1']
    #allocation5 [shape = 's32[1]{0}', space=sflag, size = 0x4, scoped, tag = 'scoped memory for tpu_custom_call.1']
    #allocation6 [shape = 'u8[16384]{0}', space=vmem, size = 0x4000, scoped, tag = 'input window, operand 1, single buffered']
    #allocation7 [shape = 's32[1]{0}', space=sflag, size = 0x4, scoped, tag = 'scoped memory for tpu_custom_call.1']
    #allocation8 [shape = 'u8[4096]{0}', space=vmem, size = 0x1000, scoped, tag = 'output window, operand 0, single buffered']
    %8 = vsyncpa [#allocation4], 0
    %9 = vsyncpa [#allocation7], 0
    %10 = vsyncpa [#allocation5], 0
    // Predicated region
    $region2: #{tpu_custom_call.1} parent=1 // pred_check
      _
    $region3: #{tpu_custom_call.1} parent=1 // pred_check_branch
      %12 = sbr.rel (0) target = $region5
    $region4: #{tpu_custom_call.1} parent=1 // pred_region
      %s14 = ssub.s32 128, 128
      %15 = vsyncadd [#allocation4], %s14
      %s17 = sshll.u32 [#allocation3], 4
      %s18 = int_to_ptr.vmem [resolvable:$true] %s17
      %20 = dma.hbm_to_vmem [thread:$0]  %s0, 128, %s18, [#allocation4]
    $region5: #{tpu_custom_call.1} parent=1 // pred_fallthru
      _
    // Predicated region
    $region6: #{tpu_custom_call.1} parent=1 // pred_check
      _
    $region7: #{tpu_custom_call.1} parent=1 // pred_check_branch
      %22 = sbr.rel (0) target = $region9
    $region8: #{tpu_custom_call.1} parent=1 // pred_region
      %s24 = ssub.s32 512, 512
      %25 = vsyncadd [#allocation7], %s24
      %s26 = sshll.u32 [#allocation6], 4
      %s27 = int_to_ptr.vmem [resolvable:$true] %s26
      %32 = dma.hbm_to_vmem [thread:$0]  %s1, 512, %s27, [#allocation7], 128, 128, 8
    $region9: #{tpu_custom_call.1} parent=1 // pred_fallthru
      _
    // Predicated region
    $region10: #{tpu_custom_call.1} parent=1 // pred_check
      _
    $region11: #{tpu_custom_call.1} parent=1 // pred_check_branch
      %34 = sbr.rel (0) target = $region13
    $region12: #{tpu_custom_call.1} parent=1 // pred_region
      _
    $region13: #{tpu_custom_call.1} parent=1 // pred_fallthru
      _
    // Predicated region
    $region14: #{tpu_custom_call.1} parent=1 // pred_check
      _
    $region15: #{tpu_custom_call.1} parent=1 // pred_check_branch
      %36 = sbr.rel (0) target = $region17
    $region16: #{tpu_custom_call.1} parent=1 // pred_region
      %37 = dma.done [#allocation4], 128
    $region17: #{tpu_custom_call.1} parent=1 // pred_fallthru
      _
    // Predicated region
    $region18: #{tpu_custom_call.1} parent=1 // pred_check
      _
    $region19: #{tpu_custom_call.1} parent=1 // pred_check_branch
      %39 = sbr.rel (0) target = $region21
    $region20: #{tpu_custom_call.1} parent=1 // pred_region
      %40 = dma.done [#allocation7], 512
    $region21: #{tpu_custom_call.1} parent=1 // pred_fallthru
      _
    %p42 = scmp.eq.s32.totalorder 0, 0
    // Predicated region
    $region22: #{tpu_custom_call.1} parent=1 // pred_check
      %p43 = pneg %p42
    $region23: #{tpu_custom_call.1} parent=1 // pred_check_branch
      %45 = sbr.rel (%p43) target = $region25
    $region24: #{tpu_custom_call.1} parent=1 // pred_region
      %46 = vst [vmem:[#allocation2] sm:$0xff] 0
      %47 = vst [vmem:[#allocation2 + $0x8] sm:$0xff] 0
      %48 = vst [vmem:[#allocation2 + $0x10] sm:$0xff] 0
      %49 = vst [vmem:[#allocation2 + $0x18] sm:$0xff] 0
    $region25: #{tpu_custom_call.1} parent=1 // pred_fallthru
      _
    %v50 = vld [vmem:[#allocation2] sm:$0xff]
    %v51 = vld [vmem:[#allocation2 + $0x8] sm:$0xff]
    %v52 = vld [vmem:[#allocation2 + $0x10] sm:$0xff]
    %v53 = vld [vmem:[#allocation2 + $0x18] sm:$0xff]
    %v54 = vld [vmem:[#allocation3] sm:$0xff]
    %v55 = vld [vmem:[#allocation6] sm:$0xff]
    %v56 = vld [vmem:[#allocation6 + $0x8] sm:$0xff]
    %v57 = vld [vmem:[#allocation6 + $0x10] sm:$0xff]
    %v58 = vld [vmem:[#allocation6 + $0x18] sm:$0xff]
    %59 = vmatprep.subr.s8.mxu0 0
    %60 = vmatpush1.s8.msra.mxu0 %v58
    %61 = vmatprep.subr.s8.mxu0 0
    %62 = vmatpush1.s8.msra.mxu0 %v57
    %63 = vmatprep.subr.s8.mxu0 0
    %64 = vmatpush1.s8.msra.mxu0 %v56
    %65 = vmatprep.subr.s8.mxu0 0
    %66 = vmatpush1.s8.msra.mxu0 %v55
    %67 = vmatprep.subr.s8.mxu0 0
    %68 = vmatpush2.s8.msra.mxu0 0
    %69 = vmatprep.subr.s8.mxu0 0
    %70 = vmatpush2.s8.msra.mxu0 0
    %71 = vmatprep.subr.s8.mxu0 0
    %72 = vmatpush2.s8.msra.mxu0 0
    %73 = vmatprep.subr.s8.mxu0 0
    %74 = vmatpush2.s8.msra.mxu0 0
    %75 = vmatprep.mubr.s8.mxu0 0
    %76 = vmatmul.mubr.s8.gmra.mxu0 %v54
    %v77 = vpop.s32.mrf.mxu0
    %v78 = vadd.s32 0, %v77
    %v79 = vpop.s32.mrf.mxu0
    %v80 = vpop.s32.mrf.mxu0
    %v81 = vadd.s32 0, %v80
    %v82 = vpop.s32.mrf.mxu0
    %v83 = vpop.s32.mrf.mxu0
    %v84 = vadd.s32 0, %v83
    %v85 = vpop.s32.mrf.mxu0
    %v86 = vpop.s32.mrf.mxu0
    %v87 = vadd.s32 0, %v86
    %v88 = vpop.s32.mrf.mxu0
    %89 = vdwg.mxu0
    %v90 = vadd.s32 %v50, %v78
    %v91 = vadd.s32 %v51, %v81
    %v92 = vadd.s32 %v52, %v84
    %v93 = vadd.s32 %v53, %v87
    %94 = vst [vmem:[#allocation2] sm:$0xff] %v90
    %95 = vst [vmem:[#allocation2 + $0x8] sm:$0xff] %v91
    %96 = vst [vmem:[#allocation2 + $0x10] sm:$0xff] %v92
    %97 = vst [vmem:[#allocation2 + $0x18] sm:$0xff] %v93
    // Predicated region
    $region26: #{tpu_custom_call.1} parent=1 // pred_check
      %p98 = pneg %p42
    $region27: #{tpu_custom_call.1} parent=1 // pred_check_branch
      %100 = sbr.rel (%p98) target = $region29
    $region28: #{tpu_custom_call.1} parent=1 // pred_region
      %v101 = vld [vmem:[#allocation2] sm:$0xff]
      %v102 = vld [vmem:[#allocation2 + $0x8] sm:$0xff]
      %v103 = vld [vmem:[#allocation2 + $0x10] sm:$0xff]
      %v104 = vld [vmem:[#allocation2 + $0x18] sm:$0xff]
      %v105 = vcvt.s32.f32 %v101
      %v106 = vcvt.s32.f32 %v102
      %v107 = vcvt.s32.f32 %v103
      %v108 = vcvt.s32.f32 %v104
      %v109 = vmul.f32 %v105, 0.02
      %v110 = vmul.f32 %v106, 0.02
      %v111 = vmul.f32 %v107, 0.02
      %v112 = vmul.f32 %v108, 0.02
      %v113 = vld [vmem:[%s2] sm:$0x1]
      %v115 = vlaneseq
      %v116 = vshrl.u32 %v115, 7
      %v117 = vsub.s32 0, %v116
      %v118 = vrot.slane %v113, %v117
      %v120 = vadd.f32 %v109, %v118
      %v121 = vadd.f32 %v110, %v118
      %v122 = vadd.f32 %v111, %v118
      %v123 = vadd.f32 %v112, %v118
      %v124 = vmax.f32 %v120, 0.0
      %v125 = vmax.f32 %v121, 0.0
      %v126 = vmax.f32 %v122, 0.0
      %v127 = vmax.f32 %v123, 0.0
      %v128 = vround.ne.pseudo %v124
      %v129 = vround.ne.pseudo %v125
      %v130 = vround.ne.pseudo %v126
      %v131 = vround.ne.pseudo %v127
      %v132 = vmax.f32 %v128, -128.0
      %v133 = vmax.f32 %v129, -128.0
      %v134 = vmax.f32 %v130, -128.0
      %v135 = vmax.f32 %v131, -128.0
      %v136 = vmin.f32 %v132, 127.0
      %v137 = vmin.f32 %v133, 127.0
      %v138 = vmin.f32 %v134, 127.0
      %v139 = vmin.f32 %v135, 127.0
      %v140 = vmax.f32 %v136, -128.0
      %v141 = vmax.f32 %v137, -128.0
      %v142 = vmax.f32 %v138, -128.0
      %v143 = vmax.f32 %v139, -128.0
      %v144 = vmin.f32 %v140, 127.0
      %v145 = vmin.f32 %v141, 127.0
      %v146 = vmin.f32 %v142, 127.0
      %v147 = vmin.f32 %v143, 127.0
      %v148 = vcvt.f32.s32.to.zero.pseudo %v144
      %v149 = vcvt.f32.s32.to.zero.pseudo %v145
      %v150 = vcvt.f32.s32.to.zero.pseudo %v146
      %v151 = vcvt.f32.s32.to.zero.pseudo %v147
      %v152 = vpack.c.b16 %v149, %v148
      %v153 = vpack.c.b16 %v151, %v150
      %v154 = vpack.c.b8 %v153, %v152
      %155 = vst [vmem:[#allocation8] sm:$0xff] %v154
    $region29: #{tpu_custom_call.1} parent=1 // pred_fallthru
      _
    // Predicated region
    $region30: #{tpu_custom_call.1} parent=1 // pred_check
      _
    $region31: #{tpu_custom_call.1} parent=1 // pred_check_branch
      %157 = sbr.rel (0) target = $region33
    $region32: #{tpu_custom_call.1} parent=1 // pred_region
      %s159 = ssub.s32 128, 128
      %160 = vsyncadd [#allocation5], %s159
      %s162 = sshll.u32 [#allocation8], 4
      %s163 = int_to_ptr.vmem [resolvable:$true] %s162
      %165 = dma.vmem_to_hbm [thread:$0]  %s163, 128, %s3, [#allocation5]
    $region33: #{tpu_custom_call.1} parent=1 // pred_fallthru
      _
    // Predicated region
    $region34: #{tpu_custom_call.1} parent=1 // pred_check
      _
    $region35: #{tpu_custom_call.1} parent=1 // pred_check_branch
      %167 = sbr.rel (0) target = $region37
    $region36: #{tpu_custom_call.1} parent=1 // pred_region
      %168 = dma.done [#allocation5], 128
    $region37: #{tpu_custom_call.1} parent=1 // pred_fallthru
      _
    %169 = vsyncpa [#allocation4], 1
    %170 = vsyncpa [#allocation7], 1
    %171 = vsyncpa [#allocation5], 1

</llo_original>
